<compile_context>
chip_gen: v5e
topology: v5e:2x2
jax: 0.10.0
libtpu: 0.0.40
codegen_flags: <defaults>
</compile_context>

<pallas_src>
import jax
import jax.numpy as jnp
from jax import lax
from jax.experimental import pallas as pl
from jax.experimental.pallas import tpu as pltpu


def attention_kernel(
    x_ref,        # (T, I)
    w_ih_ref,     # (I, 4H)   = W_ih.T, gate cols ordered (i, f, o, g)
    w_hh_ref,     # (H, 4H)   = W_hh.T, gate cols ordered (i, f, o, g)
    b_lstm_ref,   # (1, 4H)   = b_ih + b_hh, same gate order
    w_qkv_ref,    # (H, 3H)   = [W_q.T * scale | W_k.T | W_v.T]
    b_qkv_ref,    # (1, 3H)   = [b_q * scale   | b_k   | b_v  ]
    w_fused_ref,  # (H, O)    = out_proj.weight.T @ output.weight.T
    b_fused_ref,  # (1, O)    = out_proj.bias @ output.weight.T + output.bias
    y_ref,        # (T, O)    output
):
    T = x_ref.shape[0]
    H = w_hh_ref.shape[0]

    # ---------------- LSTM recurrence (batch=1) ----------------
    # Input-side projection hoisted out of the serial loop: one dense matmul.
    x_proj = (
        jnp.dot(x_ref[...], w_ih_ref[...], preferred_element_type=jnp.float32)
        + b_lstm_ref[...]
    )                                                  # (T, 4H)
    w_hh = w_hh_ref[...]                               # resident in vregs

    h = jnp.zeros((1, H), jnp.float32)
    c = jnp.zeros((1, H), jnp.float32)
    hs = []
    # Fully unrolled (T static & small): LLO sees the whole chain, indices are
    # static, and hidden rows never touch VMEM scratch.
    for t in range(T):
        gates = (
            jnp.dot(h, w_hh, preferred_element_type=jnp.float32)
            + x_proj[t:t + 1, :]
        )                                              # (1, 4H): i | f | o | g
        sig = jax.nn.sigmoid(gates[:, 0:3 * H])        # one EUP pass for i,f,o
        g_g = jnp.tanh(gates[:, 3 * H:4 * H])          # one EUP pass for g
        i_g = sig[:, 0:H]
        f_g = sig[:, H:2 * H]
        o_g = sig[:, 2 * H:3 * H]
        c = f_g * c + i_g * g_g
        h = o_g * jnp.tanh(c)
        hs.append(h)
    hidden = jnp.concatenate(hs, axis=0)               # (T, H), stays in vregs

    # ---------------- single-head self-attention ----------------
    qkv = (
        jnp.dot(hidden, w_qkv_ref[...], preferred_element_type=jnp.float32)
        + b_qkv_ref[...]
    )                                                  # (T, 3H)
    q = qkv[:, 0:H]          # already scaled by 1/sqrt(H) via folded weights
    k = qkv[:, H:2 * H]
    v = qkv[:, 2 * H:3 * H]

    # q @ k^T without materializing k.T: contract last dims.
    scores = lax.dot_general(
        q, k, dimension_numbers=(((1,), (1,)), ((), ())),
        preferred_element_type=jnp.float32,
    )                                                  # (T, T)
    m = jnp.max(scores, axis=-1, keepdims=True)
    e = jnp.exp(scores - m)
    denom = jnp.sum(e, axis=-1, keepdims=True)
    # Exact reciprocal (approx=True can exceed the 1e-4 tolerance); still one
    # reciprocal per row + broadcast multiply instead of T*T divides.
    attn = e * pl.reciprocal(denom, approx=False)
    ctx = jnp.dot(attn, v, preferred_element_type=jnp.float32)   # (T, H)

    # ---------------- fused out_proj + output Linear ----------------
    y_ref[...] = (
        jnp.dot(ctx, w_fused_ref[...], preferred_element_type=jnp.float32)
        + b_fused_ref[...]
    )


def attention_forward(x, params):
    """x: (T, input_size) float32.  Returns flat (T * output_size,) like y_pred.view(-1)."""
    T, _ = x.shape
    H = params["w_hh"].shape[1]
    O = params["w_out"].shape[0]

    # --- glue: reorder / fuse / pre-transpose weights (pure XLA, outside kernel) ---
    def reorder_gates(w):
        # PyTorch gate order along axis 0 is (i, f, g, o); kernel wants (i, f, o, g).
        return jnp.concatenate(
            [w[0:H], w[H:2 * H], w[3 * H:4 * H], w[2 * H:3 * H]], axis=0)

    w_ih_t = reorder_gates(params["w_ih"]).T                       # (I, 4H)
    w_hh_t = reorder_gates(params["w_hh"]).T                       # (H, 4H)
    b_lstm = reorder_gates(params["b_ih"] + params["b_hh"]).reshape(1, -1)

    w_q, w_k, w_v = jnp.split(params["in_proj_w"], 3, axis=0)      # each (H, H)
    b_q, b_k, b_v = jnp.split(params["in_proj_b"], 3, axis=0)      # each (H,)
    scale = 1.0 / jnp.sqrt(jnp.float32(H))                         # head_dim == H
    w_qkv_t = jnp.concatenate([(w_q * scale).T, w_k.T, w_v.T], axis=1)   # (H, 3H)
    b_qkv = jnp.concatenate([b_q * scale, b_k, b_v]).reshape(1, -1)      # (1, 3H)

    w_out_t = params["w_out"].T                                    # (H, O)
    w_fused = params["out_proj_w"].T @ w_out_t                     # (H, O)
    b_fused = (params["out_proj_b"] @ w_out_t + params["b_out"]).reshape(1, -1)

    inputs = (x, w_ih_t, w_hh_t, b_lstm, w_qkv_t, b_qkv, w_fused, b_fused)

    y = pl.pallas_call(
        attention_kernel,
        out_shape=jax.ShapeDtypeStruct((T, O), jnp.float32),
        in_specs=[pl.BlockSpec(memory_space=pltpu.MemorySpace.VMEM)] * len(inputs),
        out_specs=pl.BlockSpec(memory_space=pltpu.MemorySpace.VMEM),
    )(*inputs)
    return y.reshape(-1)


def reference_forward(x, params):
    """Pure-JAX reference mirroring the PyTorch forward."""
    T, _ = x.shape
    H = params["w_hh"].shape[1]
    h = jnp.zeros((H,), jnp.float32)
    c = jnp.zeros((H,), jnp.float32)
    hs = []
    for t in range(T):
        gates = params["w_ih"] @ x[t] + params["b_ih"] + params["w_hh"] @ h + params["b_hh"]
        i_g = jax.nn.sigmoid(gates[0:H])
        f_g = jax.nn.sigmoid(gates[H:2 * H])
        g_g = jnp.tanh(gates[2 * H:3 * H])
        o_g = jax.nn.sigmoid(gates[3 * H:4 * H])
        c = f_g * c + i_g * g_g
        h = o_g * jnp.tanh(c)
        hs.append(h)
    hidden = jnp.stack(hs)                                      # (T, H)
    w_q, w_k, w_v = jnp.split(params["in_proj_w"], 3, axis=0)
    b_q, b_k, b_v = jnp.split(params["in_proj_b"], 3, axis=0)
    q = hidden @ w_q.T + b_q
    k = hidden @ w_k.T + b_k
    v = hidden @ w_v.T + b_v
    scores = (q @ k.T) / jnp.sqrt(jnp.float32(H))
    attn = jax.nn.softmax(scores, axis=-1)
    ctx = attn @ v
    attn_out = ctx @ params["out_proj_w"].T + params["out_proj_b"]
    y = attn_out @ params["w_out"].T + params["b_out"]
    return y.reshape(-1)


def make_params(key, input_size, hidden_size, output_size):
    ks = jax.random.split(key, 10)
    H, I, O = hidden_size, input_size, output_size
    u = lambda k, shape, s: jax.random.uniform(k, shape, jnp.float32, -s, s)
    s_lstm = 1.0 / jnp.sqrt(H)
    return dict(
        w_ih=u(ks[0], (4 * H, I), s_lstm),
        w_hh=u(ks[1], (4 * H, H), s_lstm),
        b_ih=u(ks[2], (4 * H,), s_lstm),
        b_hh=u(ks[3], (4 * H,), s_lstm),
        in_proj_w=u(ks[4], (3 * H, H), 1.0 / jnp.sqrt(H)),
        in_proj_b=jnp.zeros((3 * H,), jnp.float32),
        out_proj_w=u(ks[5], (H, H), 1.0 / jnp.sqrt(H)),
        out_proj_b=jnp.zeros((H,), jnp.float32),
        w_out=u(ks[6], (O, H), 1.0 / jnp.sqrt(H)),
        b_out=u(ks[7], (O,), 1.0 / jnp.sqrt(H)),
    )


if __name__ == "__main__":
    SEQ, INPUT, HIDDEN, OUTPUT = 8, 16, 32, 4

    key = jax.random.PRNGKey(0)
    k_x, k_p = jax.random.split(key)
    x = jax.random.normal(k_x, (SEQ, INPUT), jnp.float32)
    params = make_params(k_p, INPUT, HIDDEN, OUTPUT)

    y = jax.block_until_ready(attention_forward(x, params))
    y_ref = jax.block_until_ready(reference_forward(x, params))

    assert y.shape == (SEQ * OUTPUT,)
    assert jnp.allclose(y, y_ref, rtol=1e-4, atol=1e-4), (y, y_ref)
    print("KERNEL_OK")
</pallas_src>

<mosaic_0001>
module attributes {stable_mosaic.version = 11 : i64} {
  func.func @attention_kernel(%arg0: memref<8x16xf32, #tpu.memory_space<vmem>>, %arg1: memref<16x128xf32, #tpu.memory_space<vmem>>, %arg2: memref<32x128xf32, #tpu.memory_space<vmem>>, %arg3: memref<1x128xf32, #tpu.memory_space<vmem>>, %arg4: memref<32x96xf32, #tpu.memory_space<vmem>>, %arg5: memref<1x96xf32, #tpu.memory_space<vmem>>, %arg6: memref<32x4xf32, #tpu.memory_space<vmem>>, %arg7: memref<1x4xf32, #tpu.memory_space<vmem>>, %arg8: memref<8x4xf32, #tpu.memory_space<vmem>>) attributes {dimension_semantics = [], scalar_prefetch = 0 : i64, scratch_operands = 0 : i64, tpu.core_type = #tpu.core_type<tc>} {
    %c0 = arith.constant 0 : index
    %c0_0 = arith.constant 0 : index
    %0 = vector.load %arg0[%c0, %c0_0] : memref<8x16xf32, #tpu.memory_space<vmem>>, vector<8x16xf32>
    %c0_1 = arith.constant 0 : index
    %c0_2 = arith.constant 0 : index
    %1 = vector.load %arg1[%c0_1, %c0_2] : memref<16x128xf32, #tpu.memory_space<vmem>>, vector<16x128xf32>
    %cst = arith.constant dense<0.000000e+00> : vector<8x128xf32>
    %2 = tpu.matmul %0, %1, %cst {dimension_numbers = #tpu.dot_dimension_numbers<[1], [0], [0], [1], [0, 0, 1, 1], [], []>} : vector<8x16xf32>, vector<16x128xf32>, vector<8x128xf32> -> vector<8x128xf32>
    %c0_3 = arith.constant 0 : index
    %c0_4 = arith.constant 0 : index
    %3 = vector.load %arg3[%c0_3, %c0_4] : memref<1x128xf32, #tpu.memory_space<vmem>>, vector<1x128xf32>
    %4 = vector.broadcast %3 : vector<1x128xf32> to vector<8x128xf32>
    %5 = arith.addf %2, %4 : vector<8x128xf32>
    %c0_5 = arith.constant 0 : index
    %c0_6 = arith.constant 0 : index
    %6 = vector.load %arg2[%c0_5, %c0_6] : memref<32x128xf32, #tpu.memory_space<vmem>>, vector<32x128xf32>
    %cst_7 = arith.constant 0.000000e+00 : f32
    %7 = vector.broadcast %cst_7 : f32 to vector<1x32xf32>
    %cst_8 = arith.constant 0.000000e+00 : f32
    %8 = vector.broadcast %cst_8 : f32 to vector<1x32xf32>
    %cst_9 = arith.constant dense<0.000000e+00> : vector<1x128xf32>
    %9 = tpu.matmul %7, %6, %cst_9 {dimension_numbers = #tpu.dot_dimension_numbers<[1], [0], [0], [1], [0, 0, 1, 1], [], []>} : vector<1x32xf32>, vector<32x128xf32>, vector<1x128xf32> -> vector<1x128xf32>
    %10 = vector.extract_strided_slice %5 {offsets = [0, 0], sizes = [1, 128], strides = [1, 1]} : vector<8x128xf32> to vector<1x128xf32>
    %11 = arith.addf %9, %10 : vector<1x128xf32>
    %12 = vector.extract_strided_slice %11 {offsets = [0, 0], sizes = [1, 96], strides = [1, 1]} : vector<1x128xf32> to vector<1x96xf32>
    %13 = arith.negf %12 : vector<1x96xf32>
    %14 = math.exp %13 : vector<1x96xf32>
    %cst_10 = arith.constant 1.000000e+00 : f32
    %15 = vector.broadcast %cst_10 : f32 to vector<1x96xf32>
    %16 = arith.addf %15, %14 : vector<1x96xf32>
    %17 = arith.divf %15, %16 : vector<1x96xf32>
    %18 = vector.extract_strided_slice %11 {offsets = [0, 96], sizes = [1, 32], strides = [1, 1]} : vector<1x128xf32> to vector<1x32xf32>
    %19 = math.tanh %18 : vector<1x32xf32>
    %20 = vector.extract_strided_slice %17 {offsets = [0, 0], sizes = [1, 32], strides = [1, 1]} : vector<1x96xf32> to vector<1x32xf32>
    %21 = vector.extract_strided_slice %17 {offsets = [0, 32], sizes = [1, 32], strides = [1, 1]} : vector<1x96xf32> to vector<1x32xf32>
    %22 = vector.extract_strided_slice %17 {offsets = [0, 64], sizes = [1, 32], strides = [1, 1]} : vector<1x96xf32> to vector<1x32xf32>
    %23 = arith.mulf %21, %8 : vector<1x32xf32>
    %24 = arith.mulf %20, %19 : vector<1x32xf32>
    %25 = arith.addf %23, %24 : vector<1x32xf32>
    %26 = math.tanh %25 : vector<1x32xf32>
    %27 = arith.mulf %22, %26 : vector<1x32xf32>
    %cst_11 = arith.constant dense<0.000000e+00> : vector<1x128xf32>
    %28 = tpu.matmul %27, %6, %cst_11 {dimension_numbers = #tpu.dot_dimension_numbers<[1], [0], [0], [1], [0, 0, 1, 1], [], []>} : vector<1x32xf32>, vector<32x128xf32>, vector<1x128xf32> -> vector<1x128xf32>
    %29 = vector.extract_strided_slice %5 {offsets = [1, 0], sizes = [1, 128], strides = [1, 1]} : vector<8x128xf32> to vector<1x128xf32>
    %30 = arith.addf %28, %29 : vector<1x128xf32>
    %31 = vector.extract_strided_slice %30 {offsets = [0, 0], sizes = [1, 96], strides = [1, 1]} : vector<1x128xf32> to vector<1x96xf32>
    %32 = arith.negf %31 : vector<1x96xf32>
    %33 = math.exp %32 : vector<1x96xf32>
    %cst_12 = arith.constant 1.000000e+00 : f32
    %34 = vector.broadcast %cst_12 : f32 to vector<1x96xf32>
    %35 = arith.addf %34, %33 : vector<1x96xf32>
    %36 = arith.divf %34, %35 : vector<1x96xf32>
    %37 = vector.extract_strided_slice %30 {offsets = [0, 96], sizes = [1, 32], strides = [1, 1]} : vector<1x128xf32> to vector<1x32xf32>
    %38 = math.tanh %37 : vector<1x32xf32>
    %39 = vector.extract_strided_slice %36 {offsets = [0, 0], sizes = [1, 32], strides = [1, 1]} : vector<1x96xf32> to vector<1x32xf32>
    %40 = vector.extract_strided_slice %36 {offsets = [0, 32], sizes = [1, 32], strides = [1, 1]} : vector<1x96xf32> to vector<1x32xf32>
    %41 = vector.extract_strided_slice %36 {offsets = [0, 64], sizes = [1, 32], strides = [1, 1]} : vector<1x96xf32> to vector<1x32xf32>
    %42 = arith.mulf %40, %25 : vector<1x32xf32>
    %43 = arith.mulf %39, %38 : vector<1x32xf32>
    %44 = arith.addf %42, %43 : vector<1x32xf32>
    %45 = math.tanh %44 : vector<1x32xf32>
    %46 = arith.mulf %41, %45 : vector<1x32xf32>
    %cst_13 = arith.constant dense<0.000000e+00> : vector<1x128xf32>
    %47 = tpu.matmul %46, %6, %cst_13 {dimension_numbers = #tpu.dot_dimension_numbers<[1], [0], [0], [1], [0, 0, 1, 1], [], []>} : vector<1x32xf32>, vector<32x128xf32>, vector<1x128xf32> -> vector<1x128xf32>
    %48 = vector.extract_strided_slice %5 {offsets = [2, 0], sizes = [1, 128], strides = [1, 1]} : vector<8x128xf32> to vector<1x128xf32>
    %49 = arith.addf %47, %48 : vector<1x128xf32>
    %50 = vector.extract_strided_slice %49 {offsets = [0, 0], sizes = [1, 96], strides = [1, 1]} : vector<1x128xf32> to vector<1x96xf32>
    %51 = arith.negf %50 : vector<1x96xf32>
    %52 = math.exp %51 : vector<1x96xf32>
    %cst_14 = arith.constant 1.000000e+00 : f32
    %53 = vector.broadcast %cst_14 : f32 to vector<1x96xf32>
    %54 = arith.addf %53, %52 : vector<1x96xf32>
    %55 = arith.divf %53, %54 : vector<1x96xf32>
    %56 = vector.extract_strided_slice %49 {offsets = [0, 96], sizes = [1, 32], strides = [1, 1]} : vector<1x128xf32> to vector<1x32xf32>
    %57 = math.tanh %56 : vector<1x32xf32>
    %58 = vector.extract_strided_slice %55 {offsets = [0, 0], sizes = [1, 32], strides = [1, 1]} : vector<1x96xf32> to vector<1x32xf32>
    %59 = vector.extract_strided_slice %55 {offsets = [0, 32], sizes = [1, 32], strides = [1, 1]} : vector<1x96xf32> to vector<1x32xf32>
    %60 = vector.extract_strided_slice %55 {offsets = [0, 64], sizes = [1, 32], strides = [1, 1]} : vector<1x96xf32> to vector<1x32xf32>
    %61 = arith.mulf %59, %44 : vector<1x32xf32>
    %62 = arith.mulf %58, %57 : vector<1x32xf32>
    %63 = arith.addf %61, %62 : vector<1x32xf32>
    %64 = math.tanh %63 : vector<1x32xf32>
    %65 = arith.mulf %60, %64 : vector<1x32xf32>
    %cst_15 = arith.constant dense<0.000000e+00> : vector<1x128xf32>
    %66 = tpu.matmul %65, %6, %cst_15 {dimension_numbers = #tpu.dot_dimension_numbers<[1], [0], [0], [1], [0, 0, 1, 1], [], []>} : vector<1x32xf32>, vector<32x128xf32>, vector<1x128xf32> -> vector<1x128xf32>
    %67 = vector.extract_strided_slice %5 {offsets = [3, 0], sizes = [1, 128], strides = [1, 1]} : vector<8x128xf32> to vector<1x128xf32>
    %68 = arith.addf %66, %67 : vector<1x128xf32>
    %69 = vector.extract_strided_slice %68 {offsets = [0, 0], sizes = [1, 96], strides = [1, 1]} : vector<1x128xf32> to vector<1x96xf32>
    %70 = arith.negf %69 : vector<1x96xf32>
    %71 = math.exp %70 : vector<1x96xf32>
    %cst_16 = arith.constant 1.000000e+00 : f32
    %72 = vector.broadcast %cst_16 : f32 to vector<1x96xf32>
    %73 = arith.addf %72, %71 : vector<1x96xf32>
    %74 = arith.divf %72, %73 : vector<1x96xf32>
    %75 = vector.extract_strided_slice %68 {offsets = [0, 96], sizes = [1, 32], strides = [1, 1]} : vector<1x128xf32> to vector<1x32xf32>
    %76 = math.tanh %75 : vector<1x32xf32>
    %77 = vector.extract_strided_slice %74 {offsets = [0, 0], sizes = [1, 32], strides = [1, 1]} : vector<1x96xf32> to vector<1x32xf32>
    %78 = vector.extract_strided_slice %74 {offsets = [0, 32], sizes = [1, 32], strides = [1, 1]} : vector<1x96xf32> to vector<1x32xf32>
    %79 = vector.extract_strided_slice %74 {offsets = [0, 64], sizes = [1, 32], strides = [1, 1]} : vector<1x96xf32> to vector<1x32xf32>
    %80 = arith.mulf %78, %63 : vector<1x32xf32>
    %81 = arith.mulf %77, %76 : vector<1x32xf32>
    %82 = arith.addf %80, %81 : vector<1x32xf32>
    %83 = math.tanh %82 : vector<1x32xf32>
    %84 = arith.mulf %79, %83 : vector<1x32xf32>
    %cst_17 = arith.constant dense<0.000000e+00> : vector<1x128xf32>
    %85 = tpu.matmul %84, %6, %cst_17 {dimension_numbers = #tpu.dot_dimension_numbers<[1], [0], [0], [1], [0, 0, 1, 1], [], []>} : vector<1x32xf32>, vector<32x128xf32>, vector<1x128xf32> -> vector<1x128xf32>
    %86 = vector.extract_strided_slice %5 {offsets = [4, 0], sizes = [1, 128], strides = [1, 1]} : vector<8x128xf32> to vector<1x128xf32>
    %87 = arith.addf %85, %86 : vector<1x128xf32>
    %88 = vector.extract_strided_slice %87 {offsets = [0, 0], sizes = [1, 96], strides = [1, 1]} : vector<1x128xf32> to vector<1x96xf32>
    %89 = arith.negf %88 : vector<1x96xf32>
    %90 = math.exp %89 : vector<1x96xf32>
    %cst_18 = arith.constant 1.000000e+00 : f32
    %91 = vector.broadcast %cst_18 : f32 to vector<1x96xf32>
    %92 = arith.addf %91, %90 : vector<1x96xf32>
    %93 = arith.divf %91, %92 : vector<1x96xf32>
    %94 = vector.extract_strided_slice %87 {offsets = [0, 96], sizes = [1, 32], strides = [1, 1]} : vector<1x128xf32> to vector<1x32xf32>
    %95 = math.tanh %94 : vector<1x32xf32>
    %96 = vector.extract_strided_slice %93 {offsets = [0, 0], sizes = [1, 32], strides = [1, 1]} : vector<1x96xf32> to vector<1x32xf32>
    %97 = vector.extract_strided_slice %93 {offsets = [0, 32], sizes = [1, 32], strides = [1, 1]} : vector<1x96xf32> to vector<1x32xf32>
    %98 = vector.extract_strided_slice %93 {offsets = [0, 64], sizes = [1, 32], strides = [1, 1]} : vector<1x96xf32> to vector<1x32xf32>
    %99 = arith.mulf %97, %82 : vector<1x32xf32>
    %100 = arith.mulf %96, %95 : vector<1x32xf32>
    %101 = arith.addf %99, %100 : vector<1x32xf32>
    %102 = math.tanh %101 : vector<1x32xf32>
    %103 = arith.mulf %98, %102 : vector<1x32xf32>
    %cst_19 = arith.constant dense<0.000000e+00> : vector<1x128xf32>
    %104 = tpu.matmul %103, %6, %cst_19 {dimension_numbers = #tpu.dot_dimension_numbers<[1], [0], [0], [1], [0, 0, 1, 1], [], []>} : vector<1x32xf32>, vector<32x128xf32>, vector<1x128xf32> -> vector<1x128xf32>
    %105 = vector.extract_strided_slice %5 {offsets = [5, 0], sizes = [1, 128], strides = [1, 1]} : vector<8x128xf32> to vector<1x128xf32>
    %106 = arith.addf %104, %105 : vector<1x128xf32>
    %107 = vector.extract_strided_slice %106 {offsets = [0, 0], sizes = [1, 96], strides = [1, 1]} : vector<1x128xf32> to vector<1x96xf32>
    %108 = arith.negf %107 : vector<1x96xf32>
    %109 = math.exp %108 : vector<1x96xf32>
    %cst_20 = arith.constant 1.000000e+00 : f32
    %110 = vector.broadcast %cst_20 : f32 to vector<1x96xf32>
    %111 = arith.addf %110, %109 : vector<1x96xf32>
    %112 = arith.divf %110, %111 : vector<1x96xf32>
    %113 = vector.extract_strided_slice %106 {offsets = [0, 96], sizes = [1, 32], strides = [1, 1]} : vector<1x128xf32> to vector<1x32xf32>
    %114 = math.tanh %113 : vector<1x32xf32>
    %115 = vector.extract_strided_slice %112 {offsets = [0, 0], sizes = [1, 32], strides = [1, 1]} : vector<1x96xf32> to vector<1x32xf32>
    %116 = vector.extract_strided_slice %112 {offsets = [0, 32], sizes = [1, 32], strides = [1, 1]} : vector<1x96xf32> to vector<1x32xf32>
    %117 = vector.extract_strided_slice %112 {offsets = [0, 64], sizes = [1, 32], strides = [1, 1]} : vector<1x96xf32> to vector<1x32xf32>
    %118 = arith.mulf %116, %101 : vector<1x32xf32>
    %119 = arith.mulf %115, %114 : vector<1x32xf32>
    %120 = arith.addf %118, %119 : vector<1x32xf32>
    %121 = math.tanh %120 : vector<1x32xf32>
    %122 = arith.mulf %117, %121 : vector<1x32xf32>
    %cst_21 = arith.constant dense<0.000000e+00> : vector<1x128xf32>
    %123 = tpu.matmul %122, %6, %cst_21 {dimension_numbers = #tpu.dot_dimension_numbers<[1], [0], [0], [1], [0, 0, 1, 1], [], []>} : vector<1x32xf32>, vector<32x128xf32>, vector<1x128xf32> -> vector<1x128xf32>
    %124 = vector.extract_strided_slice %5 {offsets = [6, 0], sizes = [1, 128], strides = [1, 1]} : vector<8x128xf32> to vector<1x128xf32>
    %125 = arith.addf %123, %124 : vector<1x128xf32>
    %126 = vector.extract_strided_slice %125 {offsets = [0, 0], sizes = [1, 96], strides = [1, 1]} : vector<1x128xf32> to vector<1x96xf32>
    %127 = arith.negf %126 : vector<1x96xf32>
    %128 = math.exp %127 : vector<1x96xf32>
    %cst_22 = arith.constant 1.000000e+00 : f32
    %129 = vector.broadcast %cst_22 : f32 to vector<1x96xf32>
    %130 = arith.addf %129, %128 : vector<1x96xf32>
    %131 = arith.divf %129, %130 : vector<1x96xf32>
    %132 = vector.extract_strided_slice %125 {offsets = [0, 96], sizes = [1, 32], strides = [1, 1]} : vector<1x128xf32> to vector<1x32xf32>
    %133 = math.tanh %132 : vector<1x32xf32>
    %134 = vector.extract_strided_slice %131 {offsets = [0, 0], sizes = [1, 32], strides = [1, 1]} : vector<1x96xf32> to vector<1x32xf32>
    %135 = vector.extract_strided_slice %131 {offsets = [0, 32], sizes = [1, 32], strides = [1, 1]} : vector<1x96xf32> to vector<1x32xf32>
    %136 = vector.extract_strided_slice %131 {offsets = [0, 64], sizes = [1, 32], strides = [1, 1]} : vector<1x96xf32> to vector<1x32xf32>
    %137 = arith.mulf %135, %120 : vector<1x32xf32>
    %138 = arith.mulf %134, %133 : vector<1x32xf32>
    %139 = arith.addf %137, %138 : vector<1x32xf32>
    %140 = math.tanh %139 : vector<1x32xf32>
    %141 = arith.mulf %136, %140 : vector<1x32xf32>
    %cst_23 = arith.constant dense<0.000000e+00> : vector<1x128xf32>
    %142 = tpu.matmul %141, %6, %cst_23 {dimension_numbers = #tpu.dot_dimension_numbers<[1], [0], [0], [1], [0, 0, 1, 1], [], []>} : vector<1x32xf32>, vector<32x128xf32>, vector<1x128xf32> -> vector<1x128xf32>
    %143 = vector.extract_strided_slice %5 {offsets = [7, 0], sizes = [1, 128], strides = [1, 1]} : vector<8x128xf32> to vector<1x128xf32>
    %144 = arith.addf %142, %143 : vector<1x128xf32>
    %145 = vector.extract_strided_slice %144 {offsets = [0, 0], sizes = [1, 96], strides = [1, 1]} : vector<1x128xf32> to vector<1x96xf32>
    %146 = arith.negf %145 : vector<1x96xf32>
    %147 = math.exp %146 : vector<1x96xf32>
    %cst_24 = arith.constant 1.000000e+00 : f32
    %148 = vector.broadcast %cst_24 : f32 to vector<1x96xf32>
    %149 = arith.addf %148, %147 : vector<1x96xf32>
    %150 = arith.divf %148, %149 : vector<1x96xf32>
    %151 = vector.extract_strided_slice %144 {offsets = [0, 96], sizes = [1, 32], strides = [1, 1]} : vector<1x128xf32> to vector<1x32xf32>
    %152 = math.tanh %151 : vector<1x32xf32>
    %153 = vector.extract_strided_slice %150 {offsets = [0, 0], sizes = [1, 32], strides = [1, 1]} : vector<1x96xf32> to vector<1x32xf32>
    %154 = vector.extract_strided_slice %150 {offsets = [0, 32], sizes = [1, 32], strides = [1, 1]} : vector<1x96xf32> to vector<1x32xf32>
    %155 = vector.extract_strided_slice %150 {offsets = [0, 64], sizes = [1, 32], strides = [1, 1]} : vector<1x96xf32> to vector<1x32xf32>
    %156 = arith.mulf %154, %139 : vector<1x32xf32>
    %157 = arith.mulf %153, %152 : vector<1x32xf32>
    %158 = arith.addf %156, %157 : vector<1x32xf32>
    %159 = math.tanh %158 : vector<1x32xf32>
    %160 = arith.mulf %155, %159 : vector<1x32xf32>
    %161 = tpu.concatenate %27, %46, %65, %84, %103, %122, %141, %160 in 0 : vector<1x32xf32>, vector<1x32xf32>, vector<1x32xf32>, vector<1x32xf32>, vector<1x32xf32>, vector<1x32xf32>, vector<1x32xf32>, vector<1x32xf32> -> vector<8x32xf32>
    %c0_25 = arith.constant 0 : index
    %c0_26 = arith.constant 0 : index
    %162 = vector.load %arg4[%c0_25, %c0_26] : memref<32x96xf32, #tpu.memory_space<vmem>>, vector<32x96xf32>
    %cst_27 = arith.constant dense<0.000000e+00> : vector<8x96xf32>
    %163 = tpu.matmul %161, %162, %cst_27 {dimension_numbers = #tpu.dot_dimension_numbers<[1], [0], [0], [1], [0, 0, 1, 1], [], []>} : vector<8x32xf32>, vector<32x96xf32>, vector<8x96xf32> -> vector<8x96xf32>
    %c0_28 = arith.constant 0 : index
    %c0_29 = arith.constant 0 : index
    %164 = vector.load %arg5[%c0_28, %c0_29] : memref<1x96xf32, #tpu.memory_space<vmem>>, vector<1x96xf32>
    %165 = vector.broadcast %164 : vector<1x96xf32> to vector<8x96xf32>
    %166 = arith.addf %163, %165 : vector<8x96xf32>
    %167 = vector.extract_strided_slice %166 {offsets = [0, 0], sizes = [8, 32], strides = [1, 1]} : vector<8x96xf32> to vector<8x32xf32>
    %168 = vector.extract_strided_slice %166 {offsets = [0, 32], sizes = [8, 32], strides = [1, 1]} : vector<8x96xf32> to vector<8x32xf32>
    %169 = vector.extract_strided_slice %166 {offsets = [0, 64], sizes = [8, 32], strides = [1, 1]} : vector<8x96xf32> to vector<8x32xf32>
    %cst_30 = arith.constant dense<0.000000e+00> : vector<8x8xf32>
    %170 = tpu.matmul %167, %168, %cst_30 {dimension_numbers = #tpu.dot_dimension_numbers<[1], [1], [0], [0], [0, 0, 1, 0], [], []>} : vector<8x32xf32>, vector<8x32xf32>, vector<8x8xf32> -> vector<8x8xf32>
    %cst_31 = arith.constant dense<0xFF800000> : vector<8xf32>
    %171 = vector.multi_reduction <maximumf>, %170, %cst_31 [1] : vector<8x8xf32> to vector<8xf32>
    %172 = vector.shape_cast %171 : vector<8xf32> to vector<8x1xf32>
    %173 = vector.broadcast %172 : vector<8x1xf32> to vector<8x8xf32>
    %174 = arith.subf %170, %173 : vector<8x8xf32>
    %175 = math.exp %174 : vector<8x8xf32>
    %cst_32 = arith.constant dense<0.000000e+00> : vector<8xf32>
    %176 = vector.multi_reduction <add>, %175, %cst_32 [1] : vector<8x8xf32> to vector<8xf32>
    %177 = vector.shape_cast %176 : vector<8xf32> to vector<8x1xf32>
    %178 = tpu.reciprocal %177 : vector<8x1xf32> -> vector<8x1xf32>
    %179 = vector.broadcast %178 : vector<8x1xf32> to vector<8x8xf32>
    %180 = arith.mulf %175, %179 : vector<8x8xf32>
    %cst_33 = arith.constant dense<0.000000e+00> : vector<8x32xf32>
    %181 = tpu.matmul %180, %169, %cst_33 {dimension_numbers = #tpu.dot_dimension_numbers<[1], [0], [0], [1], [0, 0, 1, 1], [], []>} : vector<8x8xf32>, vector<8x32xf32>, vector<8x32xf32> -> vector<8x32xf32>
    %c0_34 = arith.constant 0 : index
    %c0_35 = arith.constant 0 : index
    %182 = vector.load %arg6[%c0_34, %c0_35] : memref<32x4xf32, #tpu.memory_space<vmem>>, vector<32x4xf32>
    %cst_36 = arith.constant dense<0.000000e+00> : vector<8x4xf32>
    %183 = tpu.matmul %181, %182, %cst_36 {dimension_numbers = #tpu.dot_dimension_numbers<[1], [0], [0], [1], [0, 0, 1, 1], [], []>} : vector<8x32xf32>, vector<32x4xf32>, vector<8x4xf32> -> vector<8x4xf32>
    %c0_37 = arith.constant 0 : index
    %c0_38 = arith.constant 0 : index
    %184 = vector.load %arg7[%c0_37, %c0_38] : memref<1x4xf32, #tpu.memory_space<vmem>>, vector<1x4xf32>
    %185 = vector.broadcast %184 : vector<1x4xf32> to vector<8x4xf32>
    %186 = arith.addf %183, %185 : vector<8x4xf32>
    %c0_39 = arith.constant 0 : index
    %c0_40 = arith.constant 0 : index
    %187 = vector.load %arg8[%c0_39, %c0_40] : memref<8x4xf32, #tpu.memory_space<vmem>>, vector<8x4xf32>
    tpu.vector_store %arg8[%c0_39, %c0_40], %186 {strides = array<i32>} : memref<8x4xf32, #tpu.memory_space<vmem>>, vector<8x4xf32>,
    return
  }
}

</mosaic_0001>

<llo_original>
// kernel: tpu_custom_call.1
$region0: #{tpu_custom_call.1}
  #allocation0 [shape = 'u32[]', space=smem, size = 0x4, offset = 0x4, fixed_abs, tag = 'smem constant byte address 0x4 - core index']
  #allocation1 [shape = 'u32[72,128]{1,0:T(1,128)}', space=vmem, size = 0x9000, scoped, tag = 'internal scratch']
  %s0 = inlined_call_operand.hbm [shape: f32[8,16], index: 0, kind: input, shape index: {}]
  %s1 = inlined_call_operand.hbm [shape: f32[16,128], index: 1, kind: input, shape index: {}]
  %s2 = inlined_call_operand.vmem [shape: f32[32,128], index: 2, kind: input, shape index: {}]
  %s3 = inlined_call_operand.vmem [shape: f32[1,128], index: 3, kind: input, shape index: {}]
  %s4 = inlined_call_operand.hbm [shape: f32[32,96], index: 4, kind: input, shape index: {}]
  %s5 = inlined_call_operand.vmem [shape: f32[1,96], index: 5, kind: input, shape index: {}]
  %s6 = inlined_call_operand.vmem [shape: f32[32,4], index: 6, kind: input, shape index: {}]
  %s7 = inlined_call_operand.vmem [shape: f32[1,4], index: 7, kind: input, shape index: {}]
  %s8 = inlined_call_operand.vmem [shape: f32[8,4], index: 8, kind: output, shape index: {}]
  %s9 = sld [smem:[#allocation0]]
  $region54: #{tpu_custom_call.1} parent=0
    _
  %s11 = ssub.s32 1, %s9
  %s12 = scalar_select 0, %s11, %s9
  $region1: #{tpu_custom_call.1} parent=0
    #allocation2 [shape = 'u8[4096]{0}', space=vmem, size = 0x1000, scoped, tag = 'input window, operand 0, single buffered']
    #allocation3 [shape = 's32[1]{0}', space=sflag, size = 0x4, scoped, tag = 'scoped memory for tpu_custom_call.1']
    #allocation4 [shape = 'u8[8192]{0}', space=vmem, size = 0x2000, scoped, tag = 'input window, operand 1, single buffered']
    #allocation5 [shape = 's32[1]{0}', space=sflag, size = 0x4, scoped, tag = 'scoped memory for tpu_custom_call.1']
    #allocation6 [shape = 'u8[16384]{0}', space=vmem, size = 0x4000, scoped, tag = 'input window, operand 4, single buffered']
    %13 = vsyncpa [#allocation3], 0
    %14 = vsyncpa [#allocation5], 0
    // Predicated region
    $region2: #{tpu_custom_call.1} parent=1 // pred_check
      _
    $region3: #{tpu_custom_call.1} parent=1 // pred_check_branch
      %16 = sbr.rel (0) target = $region5
    $region4: #{tpu_custom_call.1} parent=1 // pred_region
      %18 = vsyncadd [#allocation3], 0
      %s20 = sshll.u32 %s0, 4
      %s21 = int_to_ptr.hbm [resolvable:$true] %s20
      %s22 = sshll.u32 [#allocation2], 4
      %s23 = int_to_ptr.vmem [resolvable:$true] %s22
      %25 = dma.hbm_to_vmem [thread:$0]  %s21, 128, %s23, [#allocation3]
    $region5: #{tpu_custom_call.1} parent=1 // pred_fallthru
      _
    // Predicated region
    $region6: #{tpu_custom_call.1} parent=1 // pred_check
      _
    $region7: #{tpu_custom_call.1} parent=1 // pred_check_branch
      %27 = sbr.rel (0) target = $region9
    $region8: #{tpu_custom_call.1} parent=1 // pred_region
      %29 = vsyncadd [#allocation5], 0
      %s30 = sshll.u32 %s1, 4
      %s31 = int_to_ptr.hbm [resolvable:$true] %s30
      %s32 = sshll.u32 [#allocation4], 4
      %s33 = int_to_ptr.vmem [resolvable:$true] %s32
      %38 = dma.hbm_to_vmem [thread:$0]  %s31, 256, %s33, [#allocation5], 128, 128, 8
    $region9: #{tpu_custom_call.1} parent=1 // pred_fallthru
      _
    // Predicated region
    $region10: #{tpu_custom_call.1} parent=1 // pred_check
      _
    $region11: #{tpu_custom_call.1} parent=1 // pred_check_branch
      %40 = sbr.rel (0) target = $region13
    $region12: #{tpu_custom_call.1} parent=1 // pred_region
      _
    $region13: #{tpu_custom_call.1} parent=1 // pred_fallthru
      _
    // Predicated region
    $region14: #{tpu_custom_call.1} parent=1 // pred_check
      _
    $region15: #{tpu_custom_call.1} parent=1 // pred_check_branch
      %42 = sbr.rel (0) target = $region17
    $region16: #{tpu_custom_call.1} parent=1 // pred_region
      _
    $region17: #{tpu_custom_call.1} parent=1 // pred_fallthru
      _
    // Predicated region
    $region18: #{tpu_custom_call.1} parent=1 // pred_check
      _
    $region19: #{tpu_custom_call.1} parent=1 // pred_check_branch
      %44 = sbr.rel (0) target = $region21
    $region20: #{tpu_custom_call.1} parent=1 // pred_region
      %46 = vsyncadd [#allocation5], 0
      %s47 = sshll.u32 %s4, 4
      %s48 = int_to_ptr.hbm [resolvable:$true] %s47
      %s49 = sshll.u32 [#allocation6], 4
      %s50 = int_to_ptr.vmem [resolvable:$true] %s49
      %55 = dma.hbm_to_vmem [thread:$0]  %s48, 512, %s50, [#allocation5], 128, 128, 8
    $region21: #{tpu_custom_call.1} parent=1 // pred_fallthru
      _
    // Predicated region
    $region22: #{tpu_custom_call.1} parent=1 // pred_check
      _
    $region23: #{tpu_custom_call.1} parent=1 // pred_check_branch
      %57 = sbr.rel (0) target = $region25
    $region24: #{tpu_custom_call.1} parent=1 // pred_region
      _
    $region25: #{tpu_custom_call.1} parent=1 // pred_fallthru
      _
    // Predicated region
    $region26: #{tpu_custom_call.1} parent=1 // pred_check
      _
    $region27: #{tpu_custom_call.1} parent=1 // pred_check_branch
      %59 = sbr.rel (0) target = $region29
    $region28: #{tpu_custom_call.1} parent=1 // pred_region
      _
    $region29: #{tpu_custom_call.1} parent=1 // pred_fallthru
      _
    // Predicated region
    $region30: #{tpu_custom_call.1} parent=1 // pred_check
      _
    $region31: #{tpu_custom_call.1} parent=1 // pred_check_branch
      %61 = sbr.rel (0) target = $region33
    $region32: #{tpu_custom_call.1} parent=1 // pred_region
      _
    $region33: #{tpu_custom_call.1} parent=1 // pred_fallthru
      _
    // Predicated region
    $region34: #{tpu_custom_call.1} parent=1 // pred_check
      _
    $region35: #{tpu_custom_call.1} parent=1 // pred_check_branch
      %63 = sbr.rel (0) target = $region37
    $region36: #{tpu_custom_call.1} parent=1 // pred_region
      %65 = dma.done [#allocation3], 128
    $region37: #{tpu_custom_call.1} parent=1 // pred_fallthru
      _
    // Predicated region
    $region38: #{tpu_custom_call.1} parent=1 // pred_check
      _
    $region39: #{tpu_custom_call.1} parent=1 // pred_check_branch
      %67 = sbr.rel (0) target = $region41
    $region40: #{tpu_custom_call.1} parent=1 // pred_region
      %69 = dma.done [#allocation5], 256
    $region41: #{tpu_custom_call.1} parent=1 // pred_fallthru
      _
    // Predicated region
    $region42: #{tpu_custom_call.1} parent=1 // pred_check
      _
    $region43: #{tpu_custom_call.1} parent=1 // pred_check_branch
      %71 = sbr.rel (0) target = $region45
    $region44: #{tpu_custom_call.1} parent=1 // pred_region
      %73 = dma.done [#allocation5], 512
    $region45: #{tpu_custom_call.1} parent=1 // pred_fallthru
      _
    %v74 = vld [vmem:[#allocation2] sm:$0xff]
    %v75 = vld [vmem:[#allocation4] sm:$0xff]
    %v76 = vld [vmem:[#allocation4 + $0x8] sm:$0xff]
    %v77 = vld [vmem:[%s3] sm:$0x1]
    %v79 = vperm.slane %v77, 0
    %vm81 = vcmask 130048
    %v83 = vsel %vm81, %v74, 0
    %85 = vmatpush.msra.mxu0 0.0
    %86 = vmatpush.msra.mxu0 0.0
    %87 = vmatpush.msra.mxu0 0.0
    %88 = vmatpush.msra.mxu0 0.0
    %89 = vmatpush.msra.mxu0 0.0
    %90 = vmatpush.msra.mxu0 0.0
    %91 = vmatpush.msra.mxu0 0.0
    %92 = vmatpush.msra.mxu0 0.0
    %93 = vmatpush.msra.mxu0 0.0
    %94 = vmatpush.msra.mxu0 0.0
    %95 = vmatpush.msra.mxu0 0.0
    %96 = vmatpush.msra.mxu0 0.0
    %97 = vmatpush.msra.mxu0 0.0
    %98 = vmatpush.msra.mxu0 0.0
    %99 = vmatpush.msra.mxu0 %v76
    %100 = vmatpush.msra.mxu0 %v75
    %101 = vmatmul.f32.gmra.mxu0 %v83
    %v102 = vpop.f32.mrf.mxu0
    %v103 = vadd.f32 %v79, %v102
    %104 = vdwg.mxu0
    %v105 = vld [vmem:[%s2] sm:$0xff]
    %v106 = vld [vmem:[%s2 + $0x8] sm:$0xff]
    %v107 = vld [vmem:[%s2 + $0x10] sm:$0xff]
    %v108 = vld [vmem:[%s2 + $0x18] sm:$0xff]
    %vm109 = vcmask 261120
    %v111 = vsel %vm109, 0.0, 0
    %113 = vmatpush.msra.mxu0 0.0
    %114 = vmatpush.msra.mxu0 0.0
    %115 = vmatpush.msra.mxu0 0.0
    %116 = vmatpush.msra.mxu0 0.0
    %117 = vmatpush.msra.mxu0 0.0
    %118 = vmatpush.msra.mxu0 0.0
    %119 = vmatpush.msra.mxu0 0.0
    %120 = vmatpush.msra.mxu0 0.0
    %121 = vmatpush.msra.mxu0 0.0
    %122 = vmatpush.msra.mxu0 0.0
    %123 = vmatpush.msra.mxu0 0.0
    %124 = vmatpush.msra.mxu0 0.0
    %125 = vmatpush.msra.mxu0 %v108
    %126 = vmatpush.msra.mxu0 %v107
    %127 = vmatpush.msra.mxu0 %v106
    %128 = vmatpush.msra.mxu0 %v105
    %129 = vmatmul.f32.gmra.mxu0 %v111
    %v130 = vpop.f32.mrf.mxu0
    %v131 = vadd.f32 %v103, %v130
    %132 = vdwg.mxu0
    %v133 = vxor.u32 %v131, 2147483648
    %v134 = vmul.f32 %v133, 1.442695
    %v135 = vpow.pop %v134
    %v136 = vadd.f32 %v135, 1.0
    %v137 = vrcp.pop %v136
    %v138 = vmul.f32 %v136, %v137
    %v139 = vsub.f32 1.0, %v138
    %v140 = vmul.f32 %v137, %v139
    %v141 = vadd.f32 %v137, %v140
    %vm142 = vweird.f32 %v136
    %vm143 = vweird.f32 %v137
    %vm144 = vmor %vm142, %vm143
    %v145 = vsel %vm144, %v137, %v141
    %v146 = vand.u32 2147483647, %v136
    %vm147 = vcmp.eq.f32.partialorder %v146, 8.507059e+37
    %v148 = vand.u32 %v136, 2147483648
    %v149 = vor.u32 1.1754944e-38, %v148
    %v150 = vsel %vm147, %v149, %v145
    %v151 = vmul.f32 1.0, %v150
    %v152 = vtanh.pop %v131
    %v153 = vmul.f32 %v151, 0.0
    %155 = vrot.lane.b32.xlu0 %v152, 32
    %v156 = vpop.permute.xlu0 %155
    %v158 = vmul.f32 %v151, %v156
    %160 = vrot.lane.b32.xlu0 %v158, 32
    %v161 = vpop.permute.xlu0 %160
    %v163 = vadd.f32 %v153, %v161
    %v164 = vtanh.pop %v163
    %166 = vrot.lane.b32.xlu0 %v164, 32
    %v167 = vpop.permute.xlu0 %166
    %v169 = vmul.f32 %v151, %v167
    %171 = vrot.lane.b32.xlu0 %v169, 64
    %v172 = vpop.permute.xlu0 %171
    %v174 = vrot.slane %v103, 1
    %v176 = vsel %vm109, %v172, 0
    %178 = vmatpush.msra.mxu0 0.0
    %179 = vmatpush.msra.mxu0 0.0
    %180 = vmatpush.msra.mxu0 0.0
    %181 = vmatpush.msra.mxu0 0.0
    %182 = vmatpush.msra.mxu0 0.0
    %183 = vmatpush.msra.mxu0 0.0
    %184 = vmatpush.msra.mxu0 0.0
    %185 = vmatpush.msra.mxu0 0.0
    %186 = vmatpush.msra.mxu0 0.0
    %187 = vmatpush.msra.mxu0 0.0
    %188 = vmatpush.msra.mxu0 0.0
    %189 = vmatpush.msra.mxu0 0.0
    %190 = vmatpush.msra.mxu0 %v108
    %191 = vmatpush.msra.mxu0 %v107
    %192 = vmatpush.msra.mxu0 %v106
    %193 = vmatpush.msra.mxu0 %v105
    %194 = vmatmul.f32.gmra.mxu0 %v176
    %v195 = vpop.f32.mrf.mxu0
    %v196 = vadd.f32 %v174, %v195
    %197 = vdwg.mxu0
    %v198 = vxor.u32 %v196, 2147483648
    %v199 = vmul.f32 %v198, 1.442695
    %v200 = vpow.pop %v199
    %v201 = vadd.f32 %v200, 1.0
    %v202 = vrcp.pop %v201
    %v203 = vmul.f32 %v201, %v202
    %v204 = vsub.f32 1.0, %v203
    %v205 = vmul.f32 %v202, %v204
    %v206 = vadd.f32 %v202, %v205
    %vm207 = vweird.f32 %v201
    %vm208 = vweird.f32 %v202
    %vm209 = vmor %vm207, %vm208
    %v210 = vsel %vm209, %v202, %v206
    %v211 = vand.u32 2147483647, %v201
    %vm212 = vcmp.eq.f32.partialorder %v211, 8.507059e+37
    %v213 = vand.u32 %v201, 2147483648
    %v214 = vor.u32 1.1754944e-38, %v213
    %v215 = vsel %vm212, %v214, %v210
    %v216 = vmul.f32 1.0, %v215
    %v217 = vtanh.pop %v196
    %v218 = vmul.f32 %v216, %v163
    %220 = vrot.lane.b32.xlu0 %v217, 32
    %v221 = vpop.permute.xlu0 %220
    %v223 = vmul.f32 %v216, %v221
    %225 = vrot.lane.b32.xlu0 %v223, 32
    %v226 = vpop.permute.xlu0 %225
    %v228 = vadd.f32 %v218, %v226
    %v229 = vtanh.pop %v228
    %231 = vrot.lane.b32.xlu0 %v229, 32
    %v232 = vpop.permute.xlu0 %231
    %v234 = vmul.f32 %v216, %v232
    %236 = vrot.lane.b32.xlu0 %v234, 64
    %v237 = vpop.permute.xlu0 %236
    %v238 = vrot.slane %v103, 2
    %v240 = vsel %vm109, %v237, 0
    %242 = vmatpush.msra.mxu0 0.0
    %243 = vmatpush.msra.mxu0 0.0
    %244 = vmatpush.msra.mxu0 0.0
    %245 = vmatpush.msra.mxu0 0.0
    %246 = vmatpush.msra.mxu0 0.0
    %247 = vmatpush.msra.mxu0 0.0
    %248 = vmatpush.msra.mxu0 0.0
    %249 = vmatpush.msra.mxu0 0.0
    %250 = vmatpush.msra.mxu0 0.0
    %251 = vmatpush.msra.mxu0 0.0
    %252 = vmatpush.msra.mxu0 0.0
    %253 = vmatpush.msra.mxu0 0.0
    %254 = vmatpush.msra.mxu0 %v108
    %255 = vmatpush.msra.mxu0 %v107
    %256 = vmatpush.msra.mxu0 %v106
    %257 = vmatpush.msra.mxu0 %v105
    %258 = vmatmul.f32.gmra.mxu0 %v240
    %v259 = vpop.f32.mrf.mxu0
    %v260 = vadd.f32 %v238, %v259
    %261 = vdwg.mxu0
    %v262 = vxor.u32 %v260, 2147483648
    %v263 = vmul.f32 %v262, 1.442695
    %v264 = vpow.pop %v263
    %v265 = vadd.f32 %v264, 1.0
    %v266 = vrcp.pop %v265
    %v267 = vmul.f32 %v265, %v266
    %v268 = vsub.f32 1.0, %v267
    %v269 = vmul.f32 %v266, %v268
    %v270 = vadd.f32 %v266, %v269
    %vm271 = vweird.f32 %v265
    %vm272 = vweird.f32 %v266
    %vm273 = vmor %vm271, %vm272
    %v274 = vsel %vm273, %v266, %v270
    %v275 = vand.u32 2147483647, %v265
    %vm276 = vcmp.eq.f32.partialorder %v275, 8.507059e+37
    %v277 = vand.u32 %v265, 2147483648
    %v278 = vor.u32 1.1754944e-38, %v277
    %v279 = vsel %vm276, %v278, %v274
    %v280 = vmul.f32 1.0, %v279
    %v281 = vtanh.pop %v260
    %v282 = vmul.f32 %v280, %v228
    %284 = vrot.lane.b32.xlu0 %v281, 32
    %v285 = vpop.permute.xlu0 %284
    %v287 = vmul.f32 %v280, %v285
    %289 = vrot.lane.b32.xlu0 %v287, 32
    %v290 = vpop.permute.xlu0 %289
    %v292 = vadd.f32 %v282, %v290
    %v293 = vtanh.pop %v292
    %295 = vrot.lane.b32.xlu0 %v293, 32
    %v296 = vpop.permute.xlu0 %295
    %v298 = vmul.f32 %v280, %v296
    %300 = vrot.lane.b32.xlu0 %v298, 64
    %v301 = vpop.permute.xlu0 %300
    %v302 = vrot.slane %v103, 3
    %v304 = vsel %vm109, %v301, 0
    %306 = vmatpush.msra.mxu0 0.0
    %307 = vmatpush.msra.mxu0 0.0
    %308 = vmatpush.msra.mxu0 0.0
    %309 = vmatpush.msra.mxu0 0.0
    %310 = vmatpush.msra.mxu0 0.0
    %311 = vmatpush.msra.mxu0 0.0
    %312 = vmatpush.msra.mxu0 0.0
    %313 = vmatpush.msra.mxu0 0.0
    %314 = vmatpush.msra.mxu0 0.0
    %315 = vmatpush.msra.mxu0 0.0
    %316 = vmatpush.msra.mxu0 0.0
    %317 = vmatpush.msra.mxu0 0.0
    %318 = vmatpush.msra.mxu0 %v108
    %319 = vmatpush.msra.mxu0 %v107
    %320 = vmatpush.msra.mxu0 %v106
    %321 = vmatpush.msra.mxu0 %v105
    %322 = vmatmul.f32.gmra.mxu0 %v304
    %v323 = vpop.f32.mrf.mxu0
    %v324 = vadd.f32 %v302, %v323
    %325 = vdwg.mxu0
    %v326 = vxor.u32 %v324, 2147483648
    %v327 = vmul.f32 %v326, 1.442695
    %v328 = vpow.pop %v327
    %v329 = vadd.f32 %v328, 1.0
    %v330 = vrcp.pop %v329
    %v331 = vmul.f32 %v329, %v330
    %v332 = vsub.f32 1.0, %v331
    %v333 = vmul.f32 %v330, %v332
    %v334 = vadd.f32 %v330, %v333
    %vm335 = vweird.f32 %v329
    %vm336 = vweird.f32 %v330
    %vm337 = vmor %vm335, %vm336
    %v338 = vsel %vm337, %v330, %v334
    %v339 = vand.u32 2147483647, %v329
    %vm340 = vcmp.eq.f32.partialorder %v339, 8.507059e+37
    %v341 = vand.u32 %v329, 2147483648
    %v342 = vor.u32 1.1754944e-38, %v341
    %v343 = vsel %vm340, %v342, %v338
    %v344 = vmul.f32 1.0, %v343
    %v345 = vtanh.pop %v324
    %v346 = vmul.f32 %v344, %v292
    %348 = vrot.lane.b32.xlu0 %v345, 32
    %v349 = vpop.permute.xlu0 %348
    %v351 = vmul.f32 %v344, %v349
    %353 = vrot.lane.b32.xlu0 %v351, 32
    %v354 = vpop.permute.xlu0 %353
    %v356 = vadd.f32 %v346, %v354
    %v357 = vtanh.pop %v356
    %359 = vrot.lane.b32.xlu0 %v357, 32
    %v360 = vpop.permute.xlu0 %359
    %v362 = vmul.f32 %v344, %v360
    %364 = vrot.lane.b32.xlu0 %v362, 64
    %v365 = vpop.permute.xlu0 %364
    %v366 = vrot.slane %v103, 4
    %v368 = vsel %vm109, %v365, 0
    %370 = vmatpush.msra.mxu0 0.0
    %371 = vmatpush.msra.mxu0 0.0
    %372 = vmatpush.msra.mxu0 0.0
    %373 = vmatpush.msra.mxu0 0.0
    %374 = vmatpush.msra.mxu0 0.0
    %375 = vmatpush.msra.mxu0 0.0
    %376 = vmatpush.msra.mxu0 0.0
    %377 = vmatpush.msra.mxu0 0.0
    %378 = vmatpush.msra.mxu0 0.0
    %379 = vmatpush.msra.mxu0 0.0
    %380 = vmatpush.msra.mxu0 0.0
    %381 = vmatpush.msra.mxu0 0.0
    %382 = vmatpush.msra.mxu0 %v108
    %383 = vmatpush.msra.mxu0 %v107
    %384 = vmatpush.msra.mxu0 %v106
    %385 = vmatpush.msra.mxu0 %v105
    %386 = vmatmul.f32.gmra.mxu0 %v368
    %v387 = vpop.f32.mrf.mxu0
    %v388 = vadd.f32 %v366, %v387
    %389 = vdwg.mxu0
    %v390 = vxor.u32 %v388, 2147483648
    %v391 = vmul.f32 %v390, 1.442695
    %v392 = vpow.pop %v391
    %v393 = vadd.f32 %v392, 1.0
    %v394 = vrcp.pop %v393
    %v395 = vmul.f32 %v393, %v394
    %v396 = vsub.f32 1.0, %v395
    %v397 = vmul.f32 %v394, %v396
    %v398 = vadd.f32 %v394, %v397
    %vm399 = vweird.f32 %v393
    %vm400 = vweird.f32 %v394
    %vm401 = vmor %vm399, %vm400
    %v402 = vsel %vm401, %v394, %v398
    %v403 = vand.u32 2147483647, %v393
    %vm404 = vcmp.eq.f32.partialorder %v403, 8.507059e+37
    %v405 = vand.u32 %v393, 2147483648
    %v406 = vor.u32 1.1754944e-38, %v405
    %v407 = vsel %vm404, %v406, %v402
    %v408 = vmul.f32 1.0, %v407
    %v409 = vtanh.pop %v388
    %v410 = vmul.f32 %v408, %v356
    %412 = vrot.lane.b32.xlu0 %v409, 32
    %v413 = vpop.permute.xlu0 %412
    %v415 = vmul.f32 %v408, %v413
    %417 = vrot.lane.b32.xlu0 %v415, 32
    %v418 = vpop.permute.xlu0 %417
    %v420 = vadd.f32 %v410, %v418
    %v421 = vtanh.pop %v420
    %423 = vrot.lane.b32.xlu0 %v421, 32
    %v424 = vpop.permute.xlu0 %423
    %v426 = vmul.f32 %v408, %v424
    %428 = vrot.lane.b32.xlu0 %v426, 64
    %v429 = vpop.permute.xlu0 %428
    %v430 = vrot.slane %v103, 5
    %v432 = vsel %vm109, %v429, 0
    %434 = vmatpush.msra.mxu0 0.0
    %435 = vmatpush.msra.mxu0 0.0
    %436 = vmatpush.msra.mxu0 0.0
    %437 = vmatpush.msra.mxu0 0.0
    %438 = vmatpush.msra.mxu0 0.0
    %439 = vmatpush.msra.mxu0 0.0
    %440 = vmatpush.msra.mxu0 0.0
    %441 = vmatpush.msra.mxu0 0.0
    %442 = vmatpush.msra.mxu0 0.0
    %443 = vmatpush.msra.mxu0 0.0
    %444 = vmatpush.msra.mxu0 0.0
    %445 = vmatpush.msra.mxu0 0.0
    %446 = vmatpush.msra.mxu0 %v108
    %447 = vmatpush.msra.mxu0 %v107
    %448 = vmatpush.msra.mxu0 %v106
    %449 = vmatpush.msra.mxu0 %v105
    %450 = vmatmul.f32.gmra.mxu0 %v432
    %v451 = vpop.f32.mrf.mxu0
    %v452 = vadd.f32 %v430, %v451
    %453 = vdwg.mxu0
    %v454 = vxor.u32 %v452, 2147483648
    %v455 = vmul.f32 %v454, 1.442695
    %v456 = vpow.pop %v455
    %v457 = vadd.f32 %v456, 1.0
    %v458 = vrcp.pop %v457
    %v459 = vmul.f32 %v457, %v458
    %v460 = vsub.f32 1.0, %v459
    %v461 = vmul.f32 %v458, %v460
    %v462 = vadd.f32 %v458, %v461
    %vm463 = vweird.f32 %v457
    %vm464 = vweird.f32 %v458
    %vm465 = vmor %vm463, %vm464
    %v466 = vsel %vm465, %v458, %v462
    %v467 = vand.u32 2147483647, %v457
    %vm468 = vcmp.eq.f32.partialorder %v467, 8.507059e+37
    %v469 = vand.u32 %v457, 2147483648
    %v470 = vor.u32 1.1754944e-38, %v469
    %v471 = vsel %vm468, %v470, %v466
    %v472 = vmul.f32 1.0, %v471
    %v473 = vtanh.pop %v452
    %v474 = vmul.f32 %v472, %v420
    %476 = vrot.lane.b32.xlu0 %v473, 32
    %v477 = vpop.permute.xlu0 %476
    %v479 = vmul.f32 %v472, %v477
    %481 = vrot.lane.b32.xlu0 %v479, 32
    %v482 = vpop.permute.xlu0 %481
    %v484 = vadd.f32 %v474, %v482
    %v485 = vtanh.pop %v484
    %487 = vrot.lane.b32.xlu0 %v485, 32
    %v488 = vpop.permute.xlu0 %487
    %v490 = vmul.f32 %v472, %v488
    %492 = vrot.lane.b32.xlu0 %v490, 64
    %v493 = vpop.permute.xlu0 %492
    %v494 = vrot.slane %v103, 6
    %v496 = vsel %vm109, %v493, 0
    %498 = vmatpush.msra.mxu0 0.0
    %499 = vmatpush.msra.mxu0 0.0
    %500 = vmatpush.msra.mxu0 0.0
    %501 = vmatpush.msra.mxu0 0.0
    %502 = vmatpush.msra.mxu0 0.0
    %503 = vmatpush.msra.mxu0 0.0
    %504 = vmatpush.msra.mxu0 0.0
    %505 = vmatpush.msra.mxu0 0.0
    %506 = vmatpush.msra.mxu0 0.0
    %507 = vmatpush.msra.mxu0 0.0
    %508 = vmatpush.msra.mxu0 0.0
    %509 = vmatpush.msra.mxu0 0.0
    %510 = vmatpush.msra.mxu0 %v108
    %511 = vmatpush.msra.mxu0 %v107
    %512 = vmatpush.msra.mxu0 %v106
    %513 = vmatpush.msra.mxu0 %v105
    %514 = vmatmul.f32.gmra.mxu0 %v496
    %v515 = vpop.f32.mrf.mxu0
    %v516 = vadd.f32 %v494, %v515
    %517 = vdwg.mxu0
    %v518 = vxor.u32 %v516, 2147483648
    %v519 = vmul.f32 %v518, 1.442695
    %v520 = vpow.pop %v519
    %v521 = vadd.f32 %v520, 1.0
    %v522 = vrcp.pop %v521
    %v523 = vmul.f32 %v521, %v522
    %v524 = vsub.f32 1.0, %v523
    %v525 = vmul.f32 %v522, %v524
    %v526 = vadd.f32 %v522, %v525
    %vm527 = vweird.f32 %v521
    %vm528 = vweird.f32 %v522
    %vm529 = vmor %vm527, %vm528
    %v530 = vsel %vm529, %v522, %v526
    %v531 = vand.u32 2147483647, %v521
    %vm532 = vcmp.eq.f32.partialorder %v531, 8.507059e+37
    %v533 = vand.u32 %v521, 2147483648
    %v534 = vor.u32 1.1754944e-38, %v533
    %v535 = vsel %vm532, %v534, %v530
    %v536 = vmul.f32 1.0, %v535
    %v537 = vtanh.pop %v516
    %v538 = vmul.f32 %v536, %v484
    %540 = vrot.lane.b32.xlu0 %v537, 32
    %v541 = vpop.permute.xlu0 %540
    %v543 = vmul.f32 %v536, %v541
    %545 = vrot.lane.b32.xlu0 %v543, 32
    %v546 = vpop.permute.xlu0 %545
    %v548 = vadd.f32 %v538, %v546
    %v549 = vtanh.pop %v548
    %551 = vrot.lane.b32.xlu0 %v549, 32
    %v552 = vpop.permute.xlu0 %551
    %v554 = vmul.f32 %v536, %v552
    %556 = vrot.lane.b32.xlu0 %v554, 64
    %v557 = vpop.permute.xlu0 %556
    %v558 = vrot.slane %v103, 7
    %v560 = vsel %vm109, %v557, 0
    %562 = vmatpush.msra.mxu0 0.0
    %563 = vmatpush.msra.mxu0 0.0
    %564 = vmatpush.msra.mxu0 0.0
    %565 = vmatpush.msra.mxu0 0.0
    %566 = vmatpush.msra.mxu0 0.0
    %567 = vmatpush.msra.mxu0 0.0
    %568 = vmatpush.msra.mxu0 0.0
    %569 = vmatpush.msra.mxu0 0.0
    %570 = vmatpush.msra.mxu0 0.0
    %571 = vmatpush.msra.mxu0 0.0
    %572 = vmatpush.msra.mxu0 0.0
    %573 = vmatpush.msra.mxu0 0.0
    %574 = vmatpush.msra.mxu0 %v108
    %575 = vmatpush.msra.mxu0 %v107
    %576 = vmatpush.msra.mxu0 %v106
    %577 = vmatpush.msra.mxu0 %v105
    %578 = vmatmul.f32.gmra.mxu0 %v560
    %v579 = vpop.f32.mrf.mxu0
    %v580 = vadd.f32 %v558, %v579
    %581 = vdwg.mxu0
    %v582 = vxor.u32 %v580, 2147483648
    %v583 = vmul.f32 %v582, 1.442695
    %v584 = vpow.pop %v583
    %v585 = vadd.f32 %v584, 1.0
    %v586 = vrcp.pop %v585
    %v587 = vmul.f32 %v585, %v586
    %v588 = vsub.f32 1.0, %v587
    %v589 = vmul.f32 %v586, %v588
    %v590 = vadd.f32 %v586, %v589
    %vm591 = vweird.f32 %v585
    %vm592 = vweird.f32 %v586
    %vm593 = vmor %vm591, %vm592
    %v594 = vsel %vm593, %v586, %v590
    %v595 = vand.u32 2147483647, %v585
    %vm596 = vcmp.eq.f32.partialorder %v595, 8.507059e+37
    %v597 = vand.u32 %v585, 2147483648
    %v598 = vor.u32 1.1754944e-38, %v597
    %v599 = vsel %vm596, %v598, %v594
    %v600 = vmul.f32 1.0, %v599
    %v601 = vtanh.pop %v580
    %v602 = vmul.f32 %v600, %v548
    %604 = vrot.lane.b32.xlu0 %v601, 32
    %v605 = vpop.permute.xlu0 %604
    %v607 = vmul.f32 %v600, %v605
    %609 = vrot.lane.b32.xlu0 %v607, 32
    %v610 = vpop.permute.xlu0 %609
    %v612 = vadd.f32 %v602, %v610
    %v613 = vtanh.pop %v612
    %615 = vrot.lane.b32.xlu0 %v613, 32
    %v616 = vpop.permute.xlu0 %615
    %v618 = vmul.f32 %v600, %v616
    %v619 = vrot.slane %v234, 7
    %v621 = vrot.slane %v298, 6
    %v623 = vrot.slane %v362, 5
    %v625 = vrot.slane %v426, 4
    %v627 = vrot.slane %v490, 3
    %v629 = vrot.slane %v554, 2
    %v632 = vrot.slane %v618, 1
    %vm634 = vcmask 1040384
    %v635 = vsel %vm634, %v169, %v619
    %vm636 = vcmask 1041408
    %v637 = vsel %vm636, %v635, %v621
    %vm638 = vcmask 1042432
    %v639 = vsel %vm638, %v637, %v623
    %vm640 = vcmask 1043456
    %v641 = vsel %vm640, %v639, %v625
    %vm642 = vcmask 1044480
    %v643 = vsel %vm642, %v641, %v627
    %vm644 = vcmask 1045504
    %v645 = vsel %vm644, %v643, %v629
    %vm646 = vcmask 1046528
    %v647 = vsel %vm646, %v645, %v632
    %v648 = vld [vmem:[#allocation6] sm:$0xff]
    %v649 = vld [vmem:[#allocation6 + $0x8] sm:$0xff]
    %v650 = vld [vmem:[#allocation6 + $0x10] sm:$0xff]
    %v651 = vld [vmem:[#allocation6 + $0x18] sm:$0xff]
    %v652 = vld [vmem:[%s5] sm:$0x1]
    %v654 = vperm.slane %v652, 0
    %657 = vrot.lane.b32.xlu0 %v647, 64
    %v658 = vpop.permute.xlu0 %657
    %v659 = vsel %vm109, %v658, 0
    %661 = vmatpush.msra.mxu0 0.0
    %662 = vmatpush.msra.mxu0 0.0
    %663 = vmatpush.msra.mxu0 0.0
    %664 = vmatpush.msra.mxu0 0.0
    %665 = vmatpush.msra.mxu0 0.0
    %666 = vmatpush.msra.mxu0 0.0
    %667 = vmatpush.msra.mxu0 0.0
    %668 = vmatpush.msra.mxu0 0.0
    %669 = vmatpush.msra.mxu0 0.0
    %670 = vmatpush.msra.mxu0 0.0
    %671 = vmatpush.msra.mxu0 0.0
    %672 = vmatpush.msra.mxu0 0.0
    %673 = vmatpush.msra.mxu0 %v651
    %674 = vmatpush.msra.mxu0 %v650
    %675 = vmatpush.msra.mxu0 %v649
    %676 = vmatpush.msra.mxu0 %v648
    %677 = vmatmul.f32.gmra.mxu0 %v659
    %v678 = vpop.f32.mrf.mxu0
    %v679 = vadd.f32 %v654, %v678
    %680 = vdwg.mxu0
    %682 = vrot.lane.b32.xlu0 %v679, 96
    %v683 = vpop.permute.xlu0 %682
    %v684 = vsel %vm109, %v679, 0
    %v686 = vsel %vm109, %v683, 0
    %688 = vmatpush.xpose.msra.mxu0 0.0
    %689 = vmatpush.xpose.msra.mxu0 0.0
    %690 = vmatpush.xpose.msra.mxu0 0.0
    %691 = vmatpush.xpose.msra.mxu0 0.0
    %692 = vmatpush.xpose.msra.mxu0 0.0
    %693 = vmatpush.xpose.msra.mxu0 0.0
    %694 = vmatpush.xpose.msra.mxu0 0.0
    %695 = vmatpush.xpose.msra.mxu0 0.0
    %696 = vmatpush.xpose.msra.mxu0 0.0
    %697 = vmatpush.xpose.msra.mxu0 0.0
    %698 = vmatpush.xpose.msra.mxu0 0.0
    %699 = vmatpush.xpose.msra.mxu0 0.0
    %700 = vmatpush.xpose.msra.mxu0 0.0
    %701 = vmatpush.xpose.msra.mxu0 0.0
    %702 = vmatpush.xpose.msra.mxu0 0.0
    %703 = vmatpush.xpose.msra.mxu0 %v686
    %704 = vmatmul.f32.gmra.mxu0 %v684
    %v705 = vpop.f32.mrf.mxu0
    %v706 = vadd.f32 0.0, %v705
    %707 = vdwg.mxu0
    %vm708 = vcmask 64512
    %v709 = vsel %vm708, %v706, -inf
    %710 = vmax.xlane.f32.xlu0 %v709
    %v711 = vpop.xlane.xlu0 %710
    %v712 = vsub.f32 %v706, %v711
    %v713 = vmul.f32 %v712, 1.442695
    %v714 = vpow.pop %v713
    %v715 = vsel %vm708, %v714, 0.0
    %716 = vadd.xlane.f32.xlu0 %v715
    %v717 = vpop.xlane.xlu0 %716
    %v718 = vrcp.pop %v717
    %v719 = vmul.f32 %v717, %v718
    %v720 = vsub.f32 1.0, %v719
    %v721 = vmul.f32 %v718, %v720
    %v722 = vadd.f32 %v718, %v721
    %vm723 = vweird.f32 %v717
    %vm724 = vweird.f32 %v718
    %vm725 = vmor %vm723, %vm724
    %v726 = vsel %vm725, %v718, %v722
    %v727 = vand.u32 2147483647, %v717
    %vm728 = vcmp.eq.f32.partialorder %v727, 8.507059e+37
    %v729 = vand.u32 %v717, 2147483648
    %v730 = vor.u32 1.1754944e-38, %v729
    %v731 = vsel %vm728, %v730, %v726
    %v732 = vmul.f32 %v714, %v731
    %733 = vrot.lane.b32.xlu0 %v679, 64
    %v734 = vpop.permute.xlu0 %733
    %v737 = vsel %vm708, %v732, 0
    %739 = vmatpush.msra.mxu0 0.0
    %740 = vmatpush.msra.mxu0 0.0
    %741 = vmatpush.msra.mxu0 0.0
    %742 = vmatpush.msra.mxu0 0.0
    %743 = vmatpush.msra.mxu0 0.0
    %744 = vmatpush.msra.mxu0 0.0
    %745 = vmatpush.msra.mxu0 0.0
    %746 = vmatpush.msra.mxu0 0.0
    %747 = vmatpush.msra.mxu0 0.0
    %748 = vmatpush.msra.mxu0 0.0
    %749 = vmatpush.msra.mxu0 0.0
    %750 = vmatpush.msra.mxu0 0.0
    %751 = vmatpush.msra.mxu0 0.0
    %752 = vmatpush.msra.mxu0 0.0
    %753 = vmatpush.msra.mxu0 0.0
    %754 = vmatpush.msra.mxu0 %v734
    %755 = vmatmul.f32.gmra.mxu0 %v737
    %v756 = vpop.f32.mrf.mxu0
    %v757 = vadd.f32 0.0, %v756
    %758 = vdwg.mxu0
    %v759 = vld [vmem:[%s6] sm:$0xff]
    %v760 = vld [vmem:[%s6 + $0x8] sm:$0xff]
    %v761 = vld [vmem:[%s6 + $0x10] sm:$0xff]
    %v762 = vld [vmem:[%s6 + $0x18] sm:$0xff]
    %v763 = vld [vmem:[%s7] sm:$0x1]
    %v765 = vperm.slane %v763, 0
    %v768 = vsel %vm109, %v757, 0
    %770 = vmatpush.msra.mxu0 0.0
    %771 = vmatpush.msra.mxu0 0.0
    %772 = vmatpush.msra.mxu0 0.0
    %773 = vmatpush.msra.mxu0 0.0
    %774 = vmatpush.msra.mxu0 0.0
    %775 = vmatpush.msra.mxu0 0.0
    %776 = vmatpush.msra.mxu0 0.0
    %777 = vmatpush.msra.mxu0 0.0
    %778 = vmatpush.msra.mxu0 0.0
    %779 = vmatpush.msra.mxu0 0.0
    %780 = vmatpush.msra.mxu0 0.0
    %781 = vmatpush.msra.mxu0 0.0
    %782 = vmatpush.msra.mxu0 %v762
    %783 = vmatpush.msra.mxu0 %v761
    %784 = vmatpush.msra.mxu0 %v760
    %785 = vmatpush.msra.mxu0 %v759
    %786 = vmatmul.f32.gmra.mxu0 %v768
    %v787 = vpop.f32.mrf.mxu0
    %v788 = vadd.f32 %v765, %v787
    %789 = vdwg.mxu0
    %vm790 = vcmask 31744
    %791 = vst.msk [vmem:[%s8] sm:$0xff] %vm790, %v788
    // Predicated region
    $region46: #{tpu_custom_call.1} parent=1 // pred_check
      _
    $region47: #{tpu_custom_call.1} parent=1 // pred_check_branch
      %793 = sbr.rel (0) target = $region49
    $region48: #{tpu_custom_call.1} parent=1 // pred_region
      _
    $region49: #{tpu_custom_call.1} parent=1 // pred_fallthru
      _
    // Predicated region
    $region50: #{tpu_custom_call.1} parent=1 // pred_check
      _
    $region51: #{tpu_custom_call.1} parent=1 // pred_check_branch
      %795 = sbr.rel (0) target = $region53
    $region52: #{tpu_custom_call.1} parent=1 // pred_region
      _
    $region53: #{tpu_custom_call.1} parent=1 // pred_fallthru
      _
    %796 = vsyncpa [#allocation3], 1
    %797 = vsyncpa [#allocation5], 1

</llo_original>
